<compile_context>
chip_gen: v6e
topology: v6e:2x2x1
jax: 0.10.0
libtpu: 0.0.40
codegen_flags: <defaults>
</compile_context>

<pallas_src>
import functools
import math

import jax
import jax.numpy as jnp
from jax import lax
from jax.experimental import pallas as pl
from jax.experimental.pallas import tpu as pltpu


def _arc_margin_kernel(x_ref, w_ref, invx_ref, invw_ref, label_ref, out_ref, *,
                       s, cos_m, sin_m, th, mm, easy_margin):
    """One (TB, TC) tile of the ArcFace logits.

    x_ref:     (TB, Dp)  matmul_dtype  raw (un-normalized) input rows
    w_ref:     (Dp, TC)  matmul_dtype  raw weight rows, pre-transposed
    invx_ref:  (TB, 1)   f32           1 / max(||x_b||, eps)
    invw_ref:  (1, TC)   f32           1 / max(||w_c||, eps)
    label_ref: (TB, 1)   int32
    out_ref:   (TB, TC)  out dtype
    """
    cj = pl.program_id(1)                                   # class-tile index

    # Canonical (M,K)x(K,N) contraction -> single MXU pass, no transpose.
    raw = jnp.dot(x_ref[...], w_ref[...],
                  preferred_element_type=jnp.float32)       # (TB, TC) f32

    # Both L2 normalizations folded in as rank-1 scalings of the small result.
    cosine = raw * invx_ref[...] * invw_ref[...]

    # Arc margin: cos(theta + m) = cos*cos_m - sin*sin_m   (all f32 VPU/EUP).
    sine = jnp.sqrt(jnp.maximum(1.0 - cosine * cosine, 0.0))
    phi = cosine * cos_m - sine * sin_m
    if easy_margin:
        phi = jnp.where(cosine > 0.0, phi, cosine)
    else:
        phi = jnp.where(cosine > th, phi, cosine - mm)

    # one_hot.scatter_(1, label, 1) blend: tile-local iota vs shifted label.
    tb, tc = cosine.shape
    local_ids = lax.broadcasted_iota(jnp.int32, (tb, tc), 1)
    local_label = label_ref[...] - cj * tc                  # (TB, 1)
    out = jnp.where(local_ids == local_label, phi, cosine) * s
    out_ref[...] = out.astype(out_ref.dtype)


def _round_up(x, n):
    return ((x + n - 1) // n) * n


def _largest_tile(total, base, cap):
    """Largest multiple of `base` that divides `total` and is <= cap (>= base).

    Caller guarantees total % base == 0 (arrays are padded)."""
    cap = max(base, min(total, (cap // base) * base))
    best = base
    t = base
    while t <= cap:
        if total % t == 0:
            best = t
        t += base
    return best


def arc_margin_product(x, weight, label, *, s=30.0, m=0.15, easy_margin=False,
                       matmul_dtype=jnp.bfloat16, out_dtype=jnp.float32,
                       block_b=None, block_c=None, vmem_budget_bytes=None):
    """x: (B, in_features), weight: (out_features, in_features), label: (B,).

    Returns (B, out_features) ArcFace logits in out_dtype."""
    B, D = x.shape
    C, D2 = weight.shape
    assert D == D2, "in_features mismatch"

    eps = 1e-12
    cos_m = math.cos(m)
    sin_m = math.sin(m)
    th = math.cos(math.pi - m)
    mm = math.sin(math.pi - m) * m

    xbytes = jnp.dtype(matmul_dtype).itemsize
    wbytes = xbytes
    outbytes = jnp.dtype(out_dtype).itemsize

    # ---- Caller-side precompute (tiny O(B*D) / O(C*D)): inverse row norms. --
    x_f32 = x.astype(jnp.float32)
    w_f32 = weight.astype(jnp.float32)
    inv_x = lax.rsqrt(jnp.maximum(jnp.sum(x_f32 * x_f32, axis=1, keepdims=True),
                                  eps * eps))                       # (B, 1)
    inv_w = lax.rsqrt(jnp.maximum(jnp.sum(w_f32 * w_f32, axis=1),
                                  eps * eps)).reshape(1, C)         # (1, C)

    # ---- Pad to hardware-friendly extents (zero padding is norm-neutral). --
    Dp = max(128, _round_up(D, 128))
    Bp = _round_up(B, 8)
    Cp = _round_up(C, 128)

    x_p = jnp.pad(x_f32, ((0, Bp - B), (0, Dp - D))).astype(matmul_dtype)
    # Weight pre-transposed once at the caller -> no per-tile XLU transpose.
    w_t = jnp.pad(w_f32.T, ((0, Dp - D), (0, Cp - C))).astype(matmul_dtype)
    inv_x_p = jnp.pad(inv_x, ((0, Bp - B), (0, 0)))
    inv_w_p = jnp.pad(inv_w, ((0, 0), (0, Cp - C)))
    label_p = jnp.pad(label.astype(jnp.int32).reshape(B, 1),
                      ((0, Bp - B), (0, 0)), constant_values=-1)

    # ---- VMEM-aware tile selection + explicit scoped-VMEM limit. ----------
    try:
        phys_vmem = int(pltpu.get_tpu_info().vmem_capacity_bytes)
    except Exception:
        phys_vmem = 64 << 20                  # conservative: v7x per-TC VMEM
    limit_cap = int(phys_vmem * 0.85)
    if vmem_budget_bytes is None:
        budget = min(limit_cap - (4 << 20), 80 << 20)
    else:
        budget = vmem_budget_bytes
    budget = max(8 << 20, budget)

    if block_c is not None:
        TC = block_c
    else:
        # Weight tile gets ~half the budget (double-buffered): TC <= B_w/(2*Dp*wbytes).
        tc_cap = max(128, (budget // 2) // (2 * Dp * wbytes))
        TC = _largest_tile(Cp, 128, min(2048, tc_cap))

    if block_b is not None:
        TB = block_b
    else:
        # Prefer a large TB: the whole weight is re-streamed once per B-tile,
        # so doubling TB halves total weight HBM traffic.
        rem = max(budget - 2 * Dp * TC * wbytes, 1 << 20)
        per_tb = 2 * (Dp * xbytes + TC * outbytes + 2 * 128 * 4)
        tb_cap = max(8, rem // per_tb)
        TB = _largest_tile(Bp, 8, min(1024, tb_cap))

    # v7x has 2 TensorCores sharing the "parallel" grid axes: when there is a
    # single B tile, keep several class tiles so both cores get work.
    if block_c is None and Bp // TB == 1:
        want = min(8, Cp // 128)
        if want > 0 and Cp // TC < want:
            t, best = 128, 128
            while t <= TC:
                if Cp % t == 0 and Cp // t >= want:
                    best = t
                t += 128
            TC = best

    assert Bp % TB == 0 and Cp % TC == 0
    grid = (Bp // TB, Cp // TC)

    # Double-buffered footprint (lane/sublane padding of the skinny refs
    # included) + headroom, clamped under physical VMEM.
    footprint = (2 * TB * Dp * xbytes            # x tiles
                 + 2 * Dp * TC * wbytes          # weight tiles
                 + 2 * TB * TC * outbytes        # output tiles
                 + 2 * 2 * TB * 128 * 4          # inv_x + labels (lane-padded)
                 + 2 * 8 * TC * 4)               # inv_w (sublane-padded)
    vmem_limit = int(min(max(footprint + (2 << 20), 16 << 20), limit_cap))

    kernel = functools.partial(
        _arc_margin_kernel, s=float(s), cos_m=cos_m, sin_m=sin_m, th=th, mm=mm,
        easy_margin=easy_margin)

    # Traffic model: x / inv_x / labels are read once per B-tile (their block
    # index is constant across the inner cj axis, so the pipeliner skips the
    # re-DMA); the weight (and inv_w) stream repeats once per B-tile.
    n_btiles = Bp // TB
    cost = pl.CostEstimate(
        flops=2 * Bp * Cp * Dp + 8 * Bp * Cp,
        transcendentals=Bp * Cp,
        bytes_accessed=(Bp * Dp * xbytes
                        + n_btiles * Cp * Dp * wbytes
                        + n_btiles * Cp * 4
                        + 2 * Bp * 4
                        + Bp * Cp * outbytes))

    out = pl.pallas_call(
        kernel,
        out_shape=jax.ShapeDtypeStruct((Bp, Cp), out_dtype),
        grid_spec=pltpu.PrefetchScalarGridSpec(
            num_scalar_prefetch=0,
            grid=grid,
            in_specs=[
                pl.BlockSpec((TB, Dp), lambda bi, cj: (bi, 0)),   # x rows
                pl.BlockSpec((Dp, TC), lambda bi, cj: (0, cj)),   # weight^T
                pl.BlockSpec((TB, 1), lambda bi, cj: (bi, 0)),    # inv ||x||
                pl.BlockSpec((1, TC), lambda bi, cj: (0, cj)),    # inv ||w||
                pl.BlockSpec((TB, 1), lambda bi, cj: (bi, 0)),    # labels
            ],
            out_specs=pl.BlockSpec((TB, TC), lambda bi, cj: (bi, cj)),
        ),
        compiler_params=pltpu.CompilerParams(
            dimension_semantics=("parallel", "parallel"),
            vmem_limit_bytes=vmem_limit),
        cost_estimate=cost,
    )(x_p, w_t, inv_x_p, inv_w_p, label_p)

    # TODO(synk): on v7x an fp8 weight-stream path (per-row scale folded into
    # inv_w) would halve the weight HBM traffic again; kept bf16 here so the
    # same code runs on v5e/v6e whose MXUs do not take fp8.
    return out[:B, :C]


if __name__ == "__main__":
    # Small shapes consistent with the module; out_features=500 / D=64 also
    # exercise the C- and D-padding paths.
    B, in_features, out_features = 16, 64, 500
    s_val, m_val = 30.0, 0.15

    key = jax.random.PRNGKey(0)
    kx, kw, kl = jax.random.split(key, 3)

    # Deterministic xavier_uniform_-style init for weight (out_features, in_features).
    bound = math.sqrt(6.0 / (in_features + out_features))
    weight = jax.random.uniform(kw, (out_features, in_features), jnp.float32,
                                minval=-bound, maxval=bound)
    x = jax.random.normal(kx, (B, in_features), jnp.float32)
    label = jax.random.randint(kl, (B,), 0, out_features, jnp.int32)

    # Pure-JAX reference (mirrors the PyTorch forward).
    cos_m, sin_m = math.cos(m_val), math.sin(m_val)
    th, mm = math.cos(math.pi - m_val), math.sin(math.pi - m_val) * m_val
    xn = x / jnp.maximum(jnp.linalg.norm(x, axis=1, keepdims=True), 1e-12)
    wn = weight / jnp.maximum(jnp.linalg.norm(weight, axis=1, keepdims=True), 1e-12)
    cosine = xn @ wn.T
    sine = jnp.sqrt(jnp.maximum(1.0 - cosine ** 2, 0.0))
    phi = cosine * cos_m - sine * sin_m
    phi = jnp.where(cosine > th, phi, cosine - mm)
    one_hot = jax.nn.one_hot(label, out_features, dtype=jnp.float32)
    ref = (one_hot * phi + (1.0 - one_hot) * cosine) * s_val

    # 1) Strict check with an f32 matmul stream and a forced 2x4 tiled grid.
    out_f32 = arc_margin_product(x, weight, label, s=s_val, m=m_val,
                                 matmul_dtype=jnp.float32,
                                 block_b=8, block_c=128)
    jax.block_until_ready(out_f32)
    assert out_f32.shape == (B, out_features)
    assert jnp.allclose(out_f32, ref, atol=2e-3, rtol=2e-3), "f32 mismatch vs reference"

    # 2) Default path: bf16 x/weight streaming, auto VMEM-aware tiling,
    #    f32 accumulation + f32 margin math.
    out_bf16 = arc_margin_product(x, weight, label, s=s_val, m=m_val)
    jax.block_until_ready(out_bf16)
    assert out_bf16.shape == (B, out_features)
    assert jnp.max(jnp.abs(out_bf16 - ref)) < 0.25, "bf16 mismatch vs reference"

    print("KERNEL_OK")
</pallas_src>

<mosaic_0001>
module attributes {stable_mosaic.version = 11 : i64} {
  func.func @_arc_margin_kernel(%arg0: i32, %arg1: i32, %arg2: memref<8x128xf32, #tpu.memory_space<vmem>>, %arg3: memref<128x128xf32, #tpu.memory_space<vmem>>, %arg4: memref<8x1xf32, #tpu.memory_space<vmem>>, %arg5: memref<1x128xf32, #tpu.memory_space<vmem>>, %arg6: memref<8x1xi32, #tpu.memory_space<vmem>>, %arg7: memref<8x128xf32, #tpu.memory_space<vmem>>) attributes {dimension_semantics = [#tpu.dimension_semantics<parallel>, #tpu.dimension_semantics<parallel>], iteration_bounds = array<i64: 2, 4>, scalar_prefetch = 0 : i64, scratch_operands = 0 : i64, tpu.core_type = #tpu.core_type<tc>, window_params = [{transform_indices = @transform_0, window_bounds = array<i64: 8, 128>}, {transform_indices = @transform_1, window_bounds = array<i64: 128, 128>}, {transform_indices = @transform_2, window_bounds = array<i64: 8, 1>}, {transform_indices = @transform_3, window_bounds = array<i64: 1, 128>}, {transform_indices = @transform_4, window_bounds = array<i64: 8, 1>}, {transform_indices = @transform_5, window_bounds = array<i64: 8, 128>}]} {
    %c0 = arith.constant 0 : index
    %c0_0 = arith.constant 0 : index
    %0 = vector.load %arg2[%c0, %c0_0] : memref<8x128xf32, #tpu.memory_space<vmem>>, vector<8x128xf32>
    %c0_1 = arith.constant 0 : index
    %c0_2 = arith.constant 0 : index
    %1 = vector.load %arg3[%c0_1, %c0_2] : memref<128x128xf32, #tpu.memory_space<vmem>>, vector<128x128xf32>
    %cst = arith.constant dense<0.000000e+00> : vector<8x128xf32>
    %2 = tpu.matmul %0, %1, %cst {dimension_numbers = #tpu.dot_dimension_numbers<[1], [0], [0], [1], [0, 0, 1, 1], [], []>} : vector<8x128xf32>, vector<128x128xf32>, vector<8x128xf32> -> vector<8x128xf32>
    %c0_3 = arith.constant 0 : index
    %c0_4 = arith.constant 0 : index
    %3 = vector.load %arg4[%c0_3, %c0_4] : memref<8x1xf32, #tpu.memory_space<vmem>>, vector<8x1xf32>
    %4 = vector.broadcast %3 : vector<8x1xf32> to vector<8x128xf32>
    %5 = arith.mulf %2, %4 : vector<8x128xf32>
    %c0_5 = arith.constant 0 : index
    %c0_6 = arith.constant 0 : index
    %6 = vector.load %arg5[%c0_5, %c0_6] : memref<1x128xf32, #tpu.memory_space<vmem>>, vector<1x128xf32>
    %7 = vector.broadcast %6 : vector<1x128xf32> to vector<8x128xf32>
    %8 = arith.mulf %5, %7 : vector<8x128xf32>
    %9 = arith.mulf %8, %8 : vector<8x128xf32>
    %cst_7 = arith.constant 1.000000e+00 : f32
    %10 = vector.broadcast %cst_7 : f32 to vector<8x128xf32>
    %11 = arith.subf %10, %9 : vector<8x128xf32>
    %cst_8 = arith.constant 0.000000e+00 : f32
    %12 = vector.broadcast %cst_8 : f32 to vector<8x128xf32>
    %13 = arith.maximumf %11, %12 : vector<8x128xf32>
    %14 = math.sqrt %13 : vector<8x128xf32>
    %cst_9 = arith.constant 0.98877108 : f32
    %15 = vector.broadcast %cst_9 : f32 to vector<8x128xf32>
    %16 = arith.mulf %8, %15 : vector<8x128xf32>
    %cst_10 = arith.constant 0.149438128 : f32
    %17 = vector.broadcast %cst_10 : f32 to vector<8x128xf32>
    %18 = arith.mulf %14, %17 : vector<8x128xf32>
    %19 = arith.subf %16, %18 : vector<8x128xf32>
    %cst_11 = arith.constant -0.98877108 : f32
    %20 = vector.broadcast %cst_11 : f32 to vector<8x128xf32>
    %21 = arith.cmpf ogt, %8, %20 : vector<8x128xf32>
    %cst_12 = arith.constant 0.0224157199 : f32
    %22 = vector.broadcast %cst_12 : f32 to vector<8x128xf32>
    %23 = arith.subf %8, %22 : vector<8x128xf32>
    %24 = arith.select %21, %19, %23 : vector<8x128xi1>, vector<8x128xf32>
    %25 = tpu.iota {dimensions = array<i32: 1>} : vector<8x128xi32>
    %c0_13 = arith.constant 0 : index
    %c0_14 = arith.constant 0 : index
    %26 = vector.load %arg6[%c0_13, %c0_14] : memref<8x1xi32, #tpu.memory_space<vmem>>, vector<8x1xi32>
    %c128_i32 = arith.constant 128 : i32
    %27 = arith.muli %arg1, %c128_i32 : i32
    %28 = vector.broadcast %27 : i32 to vector<8x1xi32>
    %29 = arith.subi %26, %28 : vector<8x1xi32>
    %30 = vector.broadcast %29 : vector<8x1xi32> to vector<8x128xi32>
    %31 = arith.cmpi eq, %25, %30 : vector<8x128xi32>
    %32 = arith.select %31, %24, %8 : vector<8x128xi1>, vector<8x128xf32>
    %cst_15 = arith.constant 3.000000e+01 : f32
    %33 = vector.broadcast %cst_15 : f32 to vector<8x128xf32>
    %34 = arith.mulf %32, %33 : vector<8x128xf32>
    %c0_16 = arith.constant 0 : index
    %c0_17 = arith.constant 0 : index
    %35 = vector.load %arg7[%c0_16, %c0_17] : memref<8x128xf32, #tpu.memory_space<vmem>>, vector<8x128xf32>
    tpu.vector_store %arg7[%c0_16, %c0_17], %34 {strides = array<i32>} : memref<8x128xf32, #tpu.memory_space<vmem>>, vector<8x128xf32>,
    return
  }
  func.func @transform_0(%arg0: i32, %arg1: i32) -> (i32, i32) {
    %c0_i32 = arith.constant 0 : i32
    %c0_i32_0 = arith.constant 0 : i32
    return %arg0, %c0_i32 : i32, i32
  }
  func.func @transform_1(%arg0: i32, %arg1: i32) -> (i32, i32) {
    %c0_i32 = arith.constant 0 : i32
    %c0_i32_0 = arith.constant 0 : i32
    return %c0_i32, %arg1 : i32, i32
  }
  func.func @transform_2(%arg0: i32, %arg1: i32) -> (i32, i32) {
    %c0_i32 = arith.constant 0 : i32
    %c0_i32_0 = arith.constant 0 : i32
    return %arg0, %c0_i32 : i32, i32
  }
  func.func @transform_3(%arg0: i32, %arg1: i32) -> (i32, i32) {
    %c0_i32 = arith.constant 0 : i32
    %c0_i32_0 = arith.constant 0 : i32
    return %c0_i32, %arg1 : i32, i32
  }
  func.func @transform_4(%arg0: i32, %arg1: i32) -> (i32, i32) {
    %c0_i32 = arith.constant 0 : i32
    %c0_i32_0 = arith.constant 0 : i32
    return %arg0, %c0_i32 : i32, i32
  }
  func.func @transform_5(%arg0: i32, %arg1: i32) -> (i32, i32) {
    %c0_i32 = arith.constant 0 : i32
    return %arg0, %arg1 : i32, i32
  }
}

</mosaic_0001>

<llo_original>
// kernel: tpu_custom_call.1
$region0: #{tpu_custom_call.1}
  #allocation0 [shape = 'u32[]', space=smem, size = 0x4, offset = 0x4, fixed_abs, tag = 'smem constant byte address 0x4 - core index']
  #allocation1 [shape = 'u32[144,128]{1,0:T(1,128)}', space=vmem, size = 0x12000, scoped, tag = 'internal scratch']
  %s0 = inlined_call_operand.vmem [shape: f32[16,128], index: 0, kind: input, shape index: {}]
  %s1 = inlined_call_operand.hbm [shape: f32[128,512], index: 1, kind: input, shape index: {}]
  %s2 = inlined_call_operand.vmem [shape: f32[16,1], index: 2, kind: input, shape index: {}]
  %s3 = inlined_call_operand.vmem [shape: f32[1,512], index: 3, kind: input, shape index: {}]
  %s4 = inlined_call_operand.vmem [shape: s32[16,1], index: 4, kind: input, shape index: {}]
  %s5 = inlined_call_operand.hbm [shape: f32[16,512], index: 5, kind: output, shape index: {}]
  %s6 = sld [smem:[#allocation0]]
  $region57: #{tpu_custom_call.1} parent=0
    _
  %s8 = ssub.s32 1, %s6
  %s9 = scalar_select 0, %s8, %s6
  $region1: #{tpu_custom_call.1} parent=0
    #allocation2 [shape = 'u8[131072]{0}', space=vmem, size = 0x20000, scoped, tag = 'input window, operand 1']
    #allocation3 [shape = 's32[2]{0}', space=sflag, size = 0x8, scoped, tag = 'scoped memory for tpu_custom_call.1']
    #allocation4 [shape = 's32[2]{0}', space=sflag, size = 0x8, scoped, tag = 'scoped memory for tpu_custom_call.1']
    #allocation5 [shape = 'u8[8192]{0}', space=vmem, size = 0x2000, scoped, tag = 'output window, operand 0']
    %10 = vsyncpa [#allocation3], 0
    %s11 = scalar_lea.sflag [#allocation3], 1
    %12 = vsyncpa %s11, 0
    %13 = vsyncpa [#allocation4], 0
    %s14 = scalar_lea.sflag [#allocation4], 1
    %15 = vsyncpa %s14, 0
    loop: start=0, step=1, limit=10
    $region2: #{tpu_custom_call.1} parent=1 // loop_pre_header
      _
    $region3: #{tpu_custom_call.1} parent=1 // loop_header
      %s17 = sphi 0, %s21
      %p18 = scmp.ge.s32.totalorder %s17, 10
      %s24 = sphi 0, %s36
      %s25 = sphi 0, %s32
      %s26 = sphi 0, %s24
      %s27 = sphi 0, %s25
      %s28 = sphi 0, %s26
      %s29 = sphi 0, %s27
      %s39 = sphi 0, %s41
      %s42 = sphi 0, %s39
      %s43 = sphi 0, %s42
      %s59 = sphi 0, %s43
      %s65 = sphi 0, %s67
      %s68 = sphi 0, %s65
      %s69 = sphi 0, %s68
      %s85 = sphi 0, %s69
      %s91 = sphi 0, %s93
      %s94 = sphi 0, %s91
      %s95 = sphi 0, %s94
      %s111 = sphi 0, %s95
      %s117 = sphi 0, %s119
      %s120 = sphi 0, %s117
      %s121 = sphi 0, %s120
      %s137 = sphi 0, %s121
      %s143 = sphi 0, %s145
      %s146 = sphi 0, %s143
      %s147 = sphi 0, %s146
      %s163 = sphi 0, %s147
      %s171 = sphi 0, %s173
      %s174 = sphi 0, %s171
      %s175 = sphi 0, %s174
      %s191 = sphi 0, %s175
    $region4: #{tpu_custom_call.1} parent=1 // loop_header_branch
      %20 = sbr.rel (%p18) target = $region8
    $region5: #{tpu_custom_call.1} parent=1 // loop_body
      %s22 = ssub.s32 %s17, 1
      %s23 = ssub.s32 %s17, 2
      %s30 = sadd.s32 1, %s25
      %p31 = scmp.ge.s32.totalorder %s30, 4
      %s32 = scalar_select %p31, 0, %s30
      %s33 = sadd.s32 1, %s24
      %s34 = scalar_select %p31, %s33, %s24
      %p35 = scmp.ge.s32.totalorder %s34, 2
      %s36 = scalar_select %p35, 0, %s34
      %s37 = ssub.s32 %s24, %s36
      %p38 = scmp.eq.s32.totalorder %s37, 0
      %s40 = sadd.s32 %s39, 1
      %s41 = scalar_select %p38, %s39, %s40
      %p44 = pneg %p38
      %p45 = scmp.eq.s32.totalorder %s17, 7
      %p46 = por %p44, %p45
      %p47 = scmp.ne.s32.totalorder %s39, %s42
      %p48 = scmp.eq.s32.totalorder %s17, 0
      %p49 = por %p47, %p48
      %p50 = scmp.ne.s32.totalorder %s39, %s42
      %p51 = scmp.eq.s32.totalorder %s22, 7
      %p52 = por %p50, %p51
      %p53 = scmp.ne.s32.totalorder %s42, %s43
      %p54 = scmp.eq.s32.totalorder %s22, 0
      %p55 = por %p53, %p54
      %p56 = scmp.ne.s32.totalorder %s42, %s43
      %p57 = scmp.eq.s32.totalorder %s23, 7
      %p58 = por %p56, %p57
      %p60 = scmp.ne.s32.totalorder %s43, %s59
      %p61 = scmp.eq.s32.totalorder %s23, 0
      %p62 = por %p60, %p61
      %s63 = ssub.s32 %s25, %s32
      %p64 = scmp.eq.s32.totalorder %s63, 0
      %s66 = sadd.s32 %s65, 1
      %s67 = scalar_select %p64, %s65, %s66
      %p70 = pneg %p64
      %p71 = scmp.eq.s32.totalorder %s17, 7
      %p72 = por %p70, %p71
      %p73 = scmp.ne.s32.totalorder %s65, %s68
      %p74 = scmp.eq.s32.totalorder %s17, 0
      %p75 = por %p73, %p74
      %p76 = scmp.ne.s32.totalorder %s65, %s68
      %p77 = scmp.eq.s32.totalorder %s22, 7
      %p78 = por %p76, %p77
      %p79 = scmp.ne.s32.totalorder %s68, %s69
      %p80 = scmp.eq.s32.totalorder %s22, 0
      %p81 = por %p79, %p80
      %p82 = scmp.ne.s32.totalorder %s68, %s69
      %p83 = scmp.eq.s32.totalorder %s23, 7
      %p84 = por %p82, %p83
      %p86 = scmp.ne.s32.totalorder %s69, %s85
      %p87 = scmp.eq.s32.totalorder %s23, 0
      %p88 = por %p86, %p87
      %s89 = ssub.s32 %s24, %s36
      %p90 = scmp.eq.s32.totalorder %s89, 0
      %s92 = sadd.s32 %s91, 1
      %s93 = scalar_select %p90, %s91, %s92
      %p96 = pneg %p90
      %p97 = scmp.eq.s32.totalorder %s17, 7
      %p98 = por %p96, %p97
      %p99 = scmp.ne.s32.totalorder %s91, %s94
      %p100 = scmp.eq.s32.totalorder %s17, 0
      %p101 = por %p99, %p100
      %p102 = scmp.ne.s32.totalorder %s91, %s94
      %p103 = scmp.eq.s32.totalorder %s22, 7
      %p104 = por %p102, %p103
      %p105 = scmp.ne.s32.totalorder %s94, %s95
      %p106 = scmp.eq.s32.totalorder %s22, 0
      %p107 = por %p105, %p106
      %p108 = scmp.ne.s32.totalorder %s94, %s95
      %p109 = scmp.eq.s32.totalorder %s23, 7
      %p110 = por %p108, %p109
      %p112 = scmp.ne.s32.totalorder %s95, %s111
      %p113 = scmp.eq.s32.totalorder %s23, 0
      %p114 = por %p112, %p113
      %s115 = ssub.s32 %s25, %s32
      %p116 = scmp.eq.s32.totalorder %s115, 0
      %s118 = sadd.s32 %s117, 1
      %s119 = scalar_select %p116, %s117, %s118
      %p122 = pneg %p116
      %p123 = scmp.eq.s32.totalorder %s17, 7
      %p124 = por %p122, %p123
      %p125 = scmp.ne.s32.totalorder %s117, %s120
      %p126 = scmp.eq.s32.totalorder %s17, 0
      %p127 = por %p125, %p126
      %p128 = scmp.ne.s32.totalorder %s117, %s120
      %p129 = scmp.eq.s32.totalorder %s22, 7
      %p130 = por %p128, %p129
      %p131 = scmp.ne.s32.totalorder %s120, %s121
      %p132 = scmp.eq.s32.totalorder %s22, 0
      %p133 = por %p131, %p132
      %p134 = scmp.ne.s32.totalorder %s120, %s121
      %p135 = scmp.eq.s32.totalorder %s23, 7
      %p136 = por %p134, %p135
      %p138 = scmp.ne.s32.totalorder %s121, %s137
      %p139 = scmp.eq.s32.totalorder %s23, 0
      %p140 = por %p138, %p139
      %s141 = ssub.s32 %s24, %s36
      %p142 = scmp.eq.s32.totalorder %s141, 0
      %s144 = sadd.s32 %s143, 1
      %s145 = scalar_select %p142, %s143, %s144
      %p148 = pneg %p142
      %p149 = scmp.eq.s32.totalorder %s17, 7
      %p150 = por %p148, %p149
      %p151 = scmp.ne.s32.totalorder %s143, %s146
      %p152 = scmp.eq.s32.totalorder %s17, 0
      %p153 = por %p151, %p152
      %p154 = scmp.ne.s32.totalorder %s143, %s146
      %p155 = scmp.eq.s32.totalorder %s22, 7
      %p156 = por %p154, %p155
      %p157 = scmp.ne.s32.totalorder %s146, %s147
      %p158 = scmp.eq.s32.totalorder %s22, 0
      %p159 = por %p157, %p158
      %p160 = scmp.ne.s32.totalorder %s146, %s147
      %p161 = scmp.eq.s32.totalorder %s23, 7
      %p162 = por %p160, %p161
      %p164 = scmp.ne.s32.totalorder %s147, %s163
      %p165 = scmp.eq.s32.totalorder %s23, 0
      %p166 = por %p164, %p165
      %s167 = ssub.s32 %s24, %s36
      %s168 = ssub.s32 %s25, %s32
      %s169 = sor.u32 %s167, %s168
      %p170 = scmp.eq.s32.totalorder %s169, 0
      %s172 = sadd.s32 %s171, 1
      %s173 = scalar_select %p170, %s171, %s172
      %p176 = pneg %p170
      %p177 = scmp.eq.s32.totalorder %s17, 7
      %p178 = por %p176, %p177
      %p179 = scmp.ne.s32.totalorder %s171, %s174
      %p180 = scmp.eq.s32.totalorder %s17, 0
      %p181 = por %p179, %p180
      %p182 = scmp.ne.s32.totalorder %s171, %s174
      %p183 = scmp.eq.s32.totalorder %s22, 7
      %p184 = por %p182, %p183
      %p185 = scmp.ne.s32.totalorder %s174, %s175
      %p186 = scmp.eq.s32.totalorder %s22, 0
      %p187 = por %p185, %p186
      %p188 = scmp.ne.s32.totalorder %s174, %s175
      %p189 = scmp.eq.s32.totalorder %s23, 7
      %p190 = por %p188, %p189
      %p192 = scmp.ne.s32.totalorder %s175, %s191
      %p193 = scmp.eq.s32.totalorder %s23, 0
      %p194 = por %p192, %p193
      %p195 = scmp.le.s32.totalorder 1, %s17
      %p196 = scmp.lt.s32.totalorder %s17, 9
      %p197 = pnand %p195, %p196
      %p198 = pneg %p197
      // Predicated region
      $region9: #{tpu_custom_call.1} parent=5 // pred_check
        _
      $region10: #{tpu_custom_call.1} parent=5 // pred_check_branch
        %200 = sbr.rel (%p197) target = $region12
      $region11: #{tpu_custom_call.1} parent=5 // pred_region
        %s201 = ssub.s32 %s17, 1
      $region12: #{tpu_custom_call.1} parent=5 // pred_fallthru
        _
      %p202 = scmp.lt.s32.totalorder %s17, 8
      // Predicated region
      $region13: #{tpu_custom_call.1} parent=5 // pred_check
        %p203 = pneg %p202
      $region14: #{tpu_custom_call.1} parent=5 // pred_check_branch
        %205 = sbr.rel (%p203) target = $region16
      $region15: #{tpu_custom_call.1} parent=5 // pred_region
        // Predicated region
        $region17: #{tpu_custom_call.1} parent=15 // pred_check
          %p206 = pneg %p49
        $region18: #{tpu_custom_call.1} parent=15 // pred_check_branch
          %208 = sbr.rel (%p206) target = $region20
        $region19: #{tpu_custom_call.1} parent=15 // pred_region
          %p209 = scmp.lt.s32.totalorder %s24, 1
          %s210 = scalar_select %p209, %s24, 1
          %s211 = smul.addr %s210, 8
          %s212 = scalar_lea.vmem %s0, %s211
        $region20: #{tpu_custom_call.1} parent=15 // pred_fallthru
          _
        // Predicated region
        $region21: #{tpu_custom_call.1} parent=15 // pred_check
          %p213 = pneg %p75
        $region22: #{tpu_custom_call.1} parent=15 // pred_check_branch
          %215 = sbr.rel (%p213) target = $region24
        $region23: #{tpu_custom_call.1} parent=15 // pred_region
          %s216 = sand.u32 %s65, 1
          %s217 = scalar_lea.sflag [#allocation3], %s216
          %s218 = sand.u32 %s65, 1
          %s219 = smul.addr %s218, 128
          %s220 = scalar_lea.vmem [#allocation2], %s219
          %s222 = ssub.s32 2048, 2048
          %223 = vsyncadd %s217, %s222
          %s224 = smul.addr %s25, 128
          %s225 = scalar_lea.hbm %s1, %s224
          %s226 = sshll.u32 %s220, 4
          %s227 = int_to_ptr.vmem [resolvable:$true] %s226
          %232 = dma.hbm_to_vmem [thread:$0]  %s225, 2048, %s227, %s217, 512, 128, 8
        $region24: #{tpu_custom_call.1} parent=15 // pred_fallthru
          _
        // Predicated region
        $region25: #{tpu_custom_call.1} parent=15 // pred_check
          %p233 = pneg %p101
        $region26: #{tpu_custom_call.1} parent=15 // pred_check_branch
          %235 = sbr.rel (%p233) target = $region28
        $region27: #{tpu_custom_call.1} parent=15 // pred_region
          %p236 = scmp.lt.s32.totalorder %s24, 1
          %s237 = scalar_select %p236, %s24, 1
          %s238 = smul.addr %s237, 8
          %s239 = scalar_lea.vmem %s2, %s238
        $region28: #{tpu_custom_call.1} parent=15 // pred_fallthru
          _
        // Predicated region
        $region29: #{tpu_custom_call.1} parent=15 // pred_check
          %p240 = pneg %p127
        $region30: #{tpu_custom_call.1} parent=15 // pred_check_branch
          %242 = sbr.rel (%p240) target = $region32
        $region31: #{tpu_custom_call.1} parent=15 // pred_region
          %p243 = scmp.lt.s32.totalorder %s25, 3
          %s244 = scalar_select %p243, %s25, 3
          %s245 = scalar_lea.vmem %s3, %s244
        $region32: #{tpu_custom_call.1} parent=15 // pred_fallthru
          _
        // Predicated region
        $region33: #{tpu_custom_call.1} parent=15 // pred_check
          %p246 = pneg %p153
        $region34: #{tpu_custom_call.1} parent=15 // pred_check_branch
          %248 = sbr.rel (%p246) target = $region36
        $region35: #{tpu_custom_call.1} parent=15 // pred_region
          %p249 = scmp.lt.s32.totalorder %s24, 1
          %s250 = scalar_select %p249, %s24, 1
          %s251 = smul.addr %s250, 8
          %s252 = scalar_lea.vmem %s4, %s251
        $region36: #{tpu_custom_call.1} parent=15 // pred_fallthru
          _
      $region16: #{tpu_custom_call.1} parent=5 // pred_fallthru
        _
      %p253 = scmp.le.s32.totalorder 1, %s17
      %p254 = scmp.lt.s32.totalorder %s17, 9
      %p255 = pnand %p253, %p254
      %p256 = pneg %p255
      // Predicated region
      $region37: #{tpu_custom_call.1} parent=5 // pred_check
        _
      $region38: #{tpu_custom_call.1} parent=5 // pred_check_branch
        %258 = sbr.rel (%p255) target = $region40
      $region39: #{tpu_custom_call.1} parent=5 // pred_region
        %s259 = ssub.s32 %s17, 1
        %s260 = sand.u32 %s68, 1
        %s261 = scalar_lea.sflag [#allocation3], %s260
        %s262 = sand.u32 %s68, 1
        %s263 = smul.addr %s262, 128
        %s264 = scalar_lea.vmem [#allocation2], %s263
        // Predicated region
        $region41: #{tpu_custom_call.1} parent=39 // pred_check
          %p265 = pneg %p81
        $region42: #{tpu_custom_call.1} parent=39 // pred_check_branch
          %267 = sbr.rel (%p265) target = $region44
        $region43: #{tpu_custom_call.1} parent=39 // pred_region
          %268 = dma.done %s261, 2048
        $region44: #{tpu_custom_call.1} parent=39 // pred_fallthru
          _
        %p269 = scmp.lt.s32.totalorder %s26, 1
        %s270 = scalar_select %p269, %s26, 1
        %s271 = smul.addr %s270, 8
        %s272 = scalar_lea.vmem %s0, %s271
        %p273 = pneg %p55
        %p274 = pneg %p52
        %s275 = sand.u32 %s68, 1
        %s276 = scalar_lea.sflag [#allocation3], %s275
        %s277 = sand.u32 %s68, 1
        %s278 = smul.addr %s277, 128
        %s279 = scalar_lea.vmem [#allocation2], %s278
        %p280 = pneg %p81
        %p281 = pneg %p78
        %p282 = scmp.lt.s32.totalorder %s26, 1
        %s283 = scalar_select %p282, %s26, 1
        %s284 = smul.addr %s283, 8
        %s285 = scalar_lea.vmem %s2, %s284
        %p286 = pneg %p107
        %p287 = pneg %p104
        %p288 = scmp.lt.s32.totalorder %s27, 3
        %s289 = scalar_select %p288, %s27, 3
        %s290 = scalar_lea.vmem %s3, %s289
        %p291 = pneg %p133
        %p292 = pneg %p130
        %p293 = scmp.lt.s32.totalorder %s26, 1
        %s294 = scalar_select %p293, %s26, 1
        %s295 = smul.addr %s294, 8
        %s296 = scalar_lea.vmem %s4, %s295
        %p297 = pneg %p159
        %p298 = pneg %p156
        %p299 = pneg %p187
        %p300 = pneg %p184
        %s301 = sand.u32 %s174, 1
        %s302 = scalar_lea.sflag [#allocation4], %s301
        %s303 = sand.u32 %s174, 1
        %s304 = smul.addr %s303, 8
        %s305 = scalar_lea.vmem [#allocation5], %s304
        %p306 = scmp.lt.s32.totalorder %s26, 1
        %s307 = scalar_select %p306, %s26, 1
        %s308 = smul.addr %s307, 8
        %s309 = scalar_lea.vmem %s0, %s308
        %p310 = scmp.lt.s32.totalorder %s26, 1
        %s311 = scalar_select %p310, %s26, 1
        %s312 = smul.addr %s311, 8
        %s313 = scalar_lea.vmem %s2, %s312
        %p314 = scmp.lt.s32.totalorder %s27, 3
        %s315 = scalar_select %p314, %s27, 3
        %s316 = scalar_lea.vmem %s3, %s315
        %p317 = scmp.lt.s32.totalorder %s26, 1
        %s318 = scalar_select %p317, %s26, 1
        %s319 = smul.addr %s318, 8
        %s320 = scalar_lea.vmem %s4, %s319
        %v321 = vld [vmem:[%s309] sm:$0xff]
        %v322 = vld [vmem:[%s264] sm:$0xff]
        %v323 = vld [vmem:[%s264 + $0x8] sm:$0xff]
        %v324 = vld [vmem:[%s264 + $0x10] sm:$0xff]
        %v325 = vld [vmem:[%s264 + $0x18] sm:$0xff]
        %v326 = vld [vmem:[%s264 + $0x20] sm:$0xff]
        %v327 = vld [vmem:[%s264 + $0x28] sm:$0xff]
        %v328 = vld [vmem:[%s264 + $0x30] sm:$0xff]
        %v329 = vld [vmem:[%s264 + $0x38] sm:$0xff]
        %v330 = vld [vmem:[%s264 + $0x40] sm:$0xff]
        %v331 = vld [vmem:[%s264 + $0x48] sm:$0xff]
        %v332 = vld [vmem:[%s264 + $0x50] sm:$0xff]
        %v333 = vld [vmem:[%s264 + $0x58] sm:$0xff]
        %v334 = vld [vmem:[%s264 + $0x60] sm:$0xff]
        %v335 = vld [vmem:[%s264 + $0x68] sm:$0xff]
        %v336 = vld [vmem:[%s264 + $0x70] sm:$0xff]
        %v337 = vld [vmem:[%s264 + $0x78] sm:$0xff]
        %338 = vmatprep.subr.mxu0 0.0
        %339 = vmatpush1.msra.mxu0 %v337
        %340 = vmatprep.subr.mxu0 0.0
        %341 = vmatpush1.msra.mxu0 %v336
        %342 = vmatprep.subr.mxu0 0.0
        %343 = vmatpush1.msra.mxu0 %v335
        %344 = vmatprep.subr.mxu0 0.0
        %345 = vmatpush1.msra.mxu0 %v334
        %346 = vmatprep.subr.mxu0 0.0
        %347 = vmatpush1.msra.mxu0 %v333
        %348 = vmatprep.subr.mxu0 0.0
        %349 = vmatpush1.msra.mxu0 %v332
        %350 = vmatprep.subr.mxu0 0.0
        %351 = vmatpush1.msra.mxu0 %v331
        %352 = vmatprep.subr.mxu0 0.0
        %353 = vmatpush1.msra.mxu0 %v330
        %354 = vmatprep.subr.mxu0 0.0
        %355 = vmatpush1.msra.mxu0 %v329
        %356 = vmatprep.subr.mxu0 0.0
        %357 = vmatpush1.msra.mxu0 %v328
        %358 = vmatprep.subr.mxu0 0.0
        %359 = vmatpush1.msra.mxu0 %v327
        %360 = vmatprep.subr.mxu0 0.0
        %361 = vmatpush1.msra.mxu0 %v326
        %362 = vmatprep.subr.mxu0 0.0
        %363 = vmatpush1.msra.mxu0 %v325
        %364 = vmatprep.subr.mxu0 0.0
        %365 = vmatpush1.msra.mxu0 %v324
        %366 = vmatprep.subr.mxu0 0.0
        %367 = vmatpush1.msra.mxu0 %v323
        %368 = vmatprep.subr.mxu0 0.0
        %369 = vmatpush1.msra.mxu0 %v322
        %370 = vmatprep.subr.mxu0 0.0
        %371 = vmatpush2.msra.mxu0 0.0
        %372 = vmatprep.subr.mxu0 0.0
        %373 = vmatpush2.msra.mxu0 0.0
        %374 = vmatprep.subr.mxu0 0.0
        %375 = vmatpush2.msra.mxu0 0.0
        %376 = vmatprep.subr.mxu0 0.0
        %377 = vmatpush2.msra.mxu0 0.0
        %378 = vmatprep.subr.mxu0 0.0
        %379 = vmatpush2.msra.mxu0 0.0
        %380 = vmatprep.subr.mxu0 0.0
        %381 = vmatpush2.msra.mxu0 0.0
        %382 = vmatprep.subr.mxu0 0.0
        %383 = vmatpush2.msra.mxu0 0.0
        %384 = vmatprep.subr.mxu0 0.0
        %385 = vmatpush2.msra.mxu0 0.0
        %386 = vmatprep.subr.mxu0 0.0
        %387 = vmatpush2.msra.mxu0 0.0
        %388 = vmatprep.subr.mxu0 0.0
        %389 = vmatpush2.msra.mxu0 0.0
        %390 = vmatprep.subr.mxu0 0.0
        %391 = vmatpush2.msra.mxu0 0.0
        %392 = vmatprep.subr.mxu0 0.0
        %393 = vmatpush2.msra.mxu0 0.0
        %394 = vmatprep.subr.mxu0 0.0
        %395 = vmatpush2.msra.mxu0 0.0
        %396 = vmatprep.subr.mxu0 0.0
        %397 = vmatpush2.msra.mxu0 0.0
        %398 = vmatprep.subr.mxu0 0.0
        %399 = vmatpush2.msra.mxu0 0.0
        %400 = vmatprep.subr.mxu0 0.0
        %401 = vmatpush2.msra.mxu0 0.0
        %402 = vmatprep.mubr.f32.mxu0 0.0
        %403 = vmatmul.mubr.f32.gmra.mxu0 %v321
        %v404 = vpop.f32.mrf.mxu0
        %v405 = vadd.f32 0.0, %v404
        %v406 = vpop.f32.mrf.mxu0
        %407 = vdwg.mxu0
        %v408 = vld [vmem:[%s313] sm:$0xff]
        %410 = vset.pattern.permute.xlu0 0
        %411 = vperm.xlu0 %410, %v408
        %v412 = vpop.permute.xlu0 %411
        %v414 = vmul.f32 %v405, %v412
        %v415 = vld [vmem:[%s316] sm:$0x1]
        %v417 = vlaneseq
        %v418 = vshrl.u32 %v417, 7
        %v419 = vsub.s32 0, %v418
        %v420 = vrot.slane %v415, %v419
        %v422 = vmul.f32 %v414, %v420
        %v423 = vmul.f32 %v422, %v422
        %v424 = vsub.f32 1.0, %v423
        %v425 = vmax.f32 %v424, 0.0
        %v426 = vrsqrt.pop %v425
        %v427 = vmul.f32 %v425, %v426
        %vm428 = vcmp.eq.f32.partialorder %v425, inf
        %v429 = vsel %vm428, %v425, %v427
        %vm430 = vcmp.eq.f32.partialorder %v425, 0.0
        %v431 = vand.u32 %v425, 2147483648
        %v432 = vsel %vm430, %v431, %v429
        %v433 = vmul.f32 %v422, 0.9887711
        %v434 = vmul.f32 %v432, 0.14943813
        %v435 = vsub.f32 %v433, %v434
        %vm436 = vcmp.gt.f32.partialorder %v422, -0.9887711
        %v437 = vsub.f32 %v422, 0.02241572
        %v438 = vsel %vm436, %v435, %v437
        %v439 = vlaneseq
        %v440 = vand.u32 %v439, 127
        %v441 = vld [vmem:[%s320] sm:$0xff]
        %s442 = smul.u32 %s27, 128
        %v443 = vstv %s442
        %v444 = vsub.s32 %v441, %v443
        %445 = vset.pattern.permute.xlu0 0
        %446 = vperm.xlu0 %445, %v444
        %v447 = vpop.permute.xlu0 %446
        %vm448 = vcmp.eq.s32.totalorder %v440, %v447
        %v449 = vsel %vm448, %v438, %v422
        %v450 = vmul.f32 %v449, 30.0
        %451 = vst [vmem:[%s305] sm:$0xff] %v450
        %s452 = sand.u32 %s174, 1
        %s453 = scalar_lea.sflag [#allocation4], %s452
        %s454 = sand.u32 %s174, 1
        %s455 = smul.addr %s454, 8
        %s456 = scalar_lea.vmem [#allocation5], %s455
        // Predicated region
        $region45: #{tpu_custom_call.1} parent=39 // pred_check
          %p457 = pneg %p184
        $region46: #{tpu_custom_call.1} parent=39 // pred_check_branch
          %459 = sbr.rel (%p457) target = $region48
        $region47: #{tpu_custom_call.1} parent=39 // pred_region
          %s461 = ssub.s32 128, 128
          %462 = vsyncadd %s453, %s461
          %s463 = smul.addr %s26, 4
          %s464 = sadd.s32 %s27, %s463
          %s465 = smul.addr %s464, 128
          %s466 = scalar_lea.hbm %s5, %s465
          %s468 = sshll.u32 %s456, 4
          %s469 = int_to_ptr.vmem [resolvable:$true] %s468
          %471 = dma.vmem_to_hbm [thread:$0]  %s469, 128, %s466, %s453
        $region48: #{tpu_custom_call.1} parent=39 // pred_fallthru
          _
      $region40: #{tpu_custom_call.1} parent=5 // pred_fallthru
        _
      %p472 = scmp.le.s32.totalorder 2, %s17
      // Predicated region
      $region49: #{tpu_custom_call.1} parent=5 // pred_check
        %p473 = pneg %p472
      $region50: #{tpu_custom_call.1} parent=5 // pred_check_branch
        %475 = sbr.rel (%p473) target = $region52
      $region51: #{tpu_custom_call.1} parent=5 // pred_region
        %s476 = ssub.s32 %s17, 2
        // Predicated region
        $region53: #{tpu_custom_call.1} parent=51 // pred_check
          %p477 = pneg %p190
        $region54: #{tpu_custom_call.1} parent=51 // pred_check_branch
          %479 = sbr.rel (%p477) target = $region56
        $region55: #{tpu_custom_call.1} parent=51 // pred_region
          %s480 = sand.u32 %s175, 1
          %s481 = scalar_lea.sflag [#allocation4], %s480
          %s482 = sand.u32 %s175, 1
          %s483 = smul.addr %s482, 8
          %s484 = scalar_lea.vmem [#allocation5], %s483
          %485 = dma.done %s481, 128
        $region56: #{tpu_custom_call.1} parent=51 // pred_fallthru
          _
      $region52: #{tpu_custom_call.1} parent=5 // pred_fallthru
        _
    $region6: #{tpu_custom_call.1} parent=1 // loop_footer
      %s21 = sadd.s32 1, %s17
    $region7: #{tpu_custom_call.1} parent=1 // loop_footer_branch
      %16 = sbr.rel target = $region3
    $region8: #{tpu_custom_call.1} parent=1 // loop_exit
      _
    %486 = vsyncpa [#allocation3], 1
    %s487 = scalar_lea.sflag [#allocation3], 1
    %488 = vsyncpa %s487, 1
    %489 = vsyncpa [#allocation4], 1
    %s490 = scalar_lea.sflag [#allocation4], 1
    %491 = vsyncpa %s490, 1

</llo_original>
